<compile_context>
chip_gen: v7x
topology: tpu7x:2x2x1
jax: 0.10.0
libtpu: 0.0.40
codegen_flags: <defaults>
</compile_context>

<pallas_src>
import functools

import jax
import jax.numpy as jnp
from jax.experimental import pallas as pl
from jax.experimental.pallas import tpu as pltpu

SCALE_FACTOR = 10.0
EPS = 1e-5


def _round_up(v, m):
    return (v + m - 1) // m * m


def dist_linear_kernel(x_ref, w_ref, o_ref, inv_x_ref):
    # x_ref: (tm, indim), w_ref: (tn, indim), o_ref: (tm, tn)
    # inv_x_ref: (tm, 1) f32 scratch, persistent across the inner (outdim) axis.
    j = pl.program_id(1)

    x = x_ref[...]
    w = w_ref[...]

    # x-side inverse norms (10x folded in): compute once per row-tile and
    # cache; reused for every column tile of the same row tile.
    @pl.when(j == 0)
    def _():
        xf = x.astype(jnp.float32)
        x_norm = jnp.sqrt(jnp.sum(xf * xf, axis=1, keepdims=True))     # (tm, 1)
        inv_x_ref[...] = SCALE_FACTOR * pl.reciprocal(x_norm + EPS, approx=True)

    # Raw Gram tile on the MXU, contracting the last axis of both operands.
    g = jax.lax.dot_general(
        x, w,
        dimension_numbers=(((1,), (1,)), ((), ())),
        preferred_element_type=jnp.float32)

    # w-side inverse norms for this column tile (tiny vs. the matmul:
    # O(tn*indim) next to O(tm*tn*indim)).
    wf = w.astype(jnp.float32)
    w_norm = jnp.sqrt(jnp.sum(wf * wf, axis=1, keepdims=True))          # (tn, 1)
    inv_w = pl.reciprocal(w_norm + EPS, approx=True)                    # (tn, 1)

    o_ref[...] = (g * inv_x_ref[...] * inv_w.T).astype(o_ref.dtype)


@functools.partial(jax.jit, static_argnames=("tm", "tn", "compute_dtype"))
def dist_linear(x, weight, *, tm=128, tn=128, compute_dtype=None):
    """x: (N, indim), weight: (outdim, indim) -> (N, outdim) f32 scores."""
    n, indim = x.shape
    outdim, indim_w = weight.shape
    assert indim == indim_w

    # Tile sizes: sublane-aligned N tile, lane-dense (multiple-of-128) outdim
    # tile.  Shrink tiles for tiny problems so we don't over-pad.
    tm = min(tm, _round_up(n, 8))
    tn = min(tn, _round_up(outdim, 128))

    n_pad = _round_up(n, tm)
    out_pad = _round_up(outdim, tn)

    x_p = x if n_pad == n else jnp.pad(x, ((0, n_pad - n), (0, 0)))
    w_p = weight if out_pad == outdim else jnp.pad(
        weight, ((0, out_pad - outdim), (0, 0)))

    if compute_dtype is not None:
        # bf16 operands for the v6e/v7x 256x256 MXU at real head sizes.
        x_p = x_p.astype(compute_dtype)
        w_p = w_p.astype(compute_dtype)

    grid = (n_pad // tm, out_pad // tn)

    # VMEM budget: double-buffered input tiles + output tile + scratch, with
    # 2x headroom; clamped to the v7x physical per-core VMEM.
    itemsize = x_p.dtype.itemsize
    vmem_needed = (2 * (tm + tn) * indim * itemsize   # double-buffered inputs
                   + 2 * tm * tn * 4                  # double-buffered output
                   + tm * 128 * 4)                    # (tm,1) scratch, lane-padded
    vmem_limit = int(min(64 * 2**20, max(2 * vmem_needed, 16 * 2**20)))

    out = pl.pallas_call(
        dist_linear_kernel,
        out_shape=jax.ShapeDtypeStruct((n_pad, out_pad), jnp.float32),
        grid=grid,
        in_specs=[
            pl.BlockSpec((tm, indim), lambda i, j: (i, 0)),
            pl.BlockSpec((tn, indim), lambda i, j: (j, 0)),
        ],
        out_specs=pl.BlockSpec((tm, tn), lambda i, j: (i, j)),
        scratch_shapes=[pltpu.VMEM((tm, 1), jnp.float32)],
        compiler_params=pltpu.CompilerParams(
            dimension_semantics=("parallel", "arbitrary"),
            vmem_limit_bytes=vmem_limit),
    )(x_p, w_p)

    # Slice off the lane/sublane padding.
    return out[:n, :outdim]


def dist_linear_ref(x, weight):
    """Pure-JAX reference mirroring the PyTorch forward."""
    x_norm = jnp.linalg.norm(x, ord=2, axis=1, keepdims=True)
    x_normalized = x / (x_norm + EPS)
    w_norm = jnp.linalg.norm(weight, ord=2, axis=1, keepdims=True)
    w_normalized = weight / (w_norm + EPS)
    return SCALE_FACTOR * (x_normalized @ w_normalized.T)


if __name__ == "__main__":
    key = jax.random.PRNGKey(0)
    kx, kw, kx2, kw2 = jax.random.split(key, 4)

    # Small shapes consistent with distLinear: batch=8, indim=32, outdim=16.
    N, INDIM, OUTDIM = 8, 32, 16
    x = jax.random.normal(kx, (N, INDIM), dtype=jnp.float32)
    weight = jax.random.normal(kw, (OUTDIM, INDIM), dtype=jnp.float32) * 0.1

    out = jax.block_until_ready(dist_linear(x, weight))
    ref = dist_linear_ref(x, weight)
    assert out.shape == (N, OUTDIM)
    # Tolerance loosened slightly to cover the EUP approx reciprocal.
    assert jnp.allclose(out, ref, atol=5e-3, rtol=5e-3)

    # Second check exercising the 2-D grid + padding + scratch-caching paths
    # (multiple N tiles and outdim tiles).
    N2, INDIM2, OUTDIM2 = 24, 64, 300
    x2 = jax.random.normal(kx2, (N2, INDIM2), dtype=jnp.float32)
    w2 = jax.random.normal(kw2, (OUTDIM2, INDIM2), dtype=jnp.float32) * 0.05
    out2 = jax.block_until_ready(dist_linear(x2, w2, tm=8, tn=128))
    ref2 = dist_linear_ref(x2, w2)
    assert out2.shape == (N2, OUTDIM2)
    assert jnp.allclose(out2, ref2, atol=5e-3, rtol=5e-3)

    print("KERNEL_OK")
</pallas_src>

<mosaic_0001>
module attributes {stable_mosaic.version = 11 : i64} {
  func.func @dist_linear_kernel(%arg0: i32, %arg1: i32, %arg2: memref<8x32xf32, #tpu.memory_space<vmem>>, %arg3: memref<128x32xf32, #tpu.memory_space<vmem>>, %arg4: memref<8x128xf32, #tpu.memory_space<vmem>>, %arg5: memref<8x1xf32, #tpu.memory_space<vmem>>) attributes {dimension_semantics = [#tpu.dimension_semantics<parallel>, #tpu.dimension_semantics<arbitrary>], iteration_bounds = array<i64: 1, 1>, scalar_prefetch = 0 : i64, scratch_operands = 1 : i64, tpu.core_type = #tpu.core_type<tc>, window_params = [{transform_indices = @transform_0, window_bounds = array<i64: 8, 32>}, {transform_indices = @transform_1, window_bounds = array<i64: 128, 32>}, {transform_indices = @transform_2, window_bounds = array<i64: 8, 128>}]} {
    %c0 = arith.constant 0 : index
    %c0_0 = arith.constant 0 : index
    %0 = vector.load %arg2[%c0, %c0_0] : memref<8x32xf32, #tpu.memory_space<vmem>>, vector<8x32xf32>
    %c0_1 = arith.constant 0 : index
    %c0_2 = arith.constant 0 : index
    %1 = vector.load %arg3[%c0_1, %c0_2] : memref<128x32xf32, #tpu.memory_space<vmem>>, vector<128x32xf32>
    %c0_i32 = arith.constant 0 : i32
    %2 = arith.cmpi eq, %arg1, %c0_i32 : i32
    %3 = arith.extui %2 : i1 to i32
    %c0_i32_3 = arith.constant 0 : i32
    %4 = arith.cmpi ne, %3, %c0_i32_3 : i32
    scf.if %4 {
      %20 = arith.mulf %0, %0 : vector<8x32xf32>
      %cst_10 = arith.constant dense<0.000000e+00> : vector<8xf32>
      %21 = vector.multi_reduction <add>, %20, %cst_10 [1] : vector<8x32xf32> to vector<8xf32>
      %22 = vector.shape_cast %21 : vector<8xf32> to vector<8x1xf32>
      %23 = math.sqrt %22 : vector<8x1xf32>
      %cst_11 = arith.constant 9.99999974E-6 : f32
      %24 = vector.broadcast %cst_11 : f32 to vector<8x1xf32>
      %25 = arith.addf %23, %24 : vector<8x1xf32>
      %26 = tpu.reciprocal %25 {approx = true} : vector<8x1xf32> -> vector<8x1xf32>
      %cst_12 = arith.constant 1.000000e+01 : f32
      %27 = vector.broadcast %cst_12 : f32 to vector<8x1xf32>
      %28 = arith.mulf %27, %26 : vector<8x1xf32>
      %c0_13 = arith.constant 0 : index
      %c0_14 = arith.constant 0 : index
      %29 = vector.load %arg5[%c0_13, %c0_14] : memref<8x1xf32, #tpu.memory_space<vmem>>, vector<8x1xf32>
      tpu.vector_store %arg5[%c0_13, %c0_14], %28 {strides = array<i32>} : memref<8x1xf32, #tpu.memory_space<vmem>>, vector<8x1xf32>,
    } else {
    }
    %cst = arith.constant dense<0.000000e+00> : vector<8x128xf32>
    %5 = tpu.matmul %0, %1, %cst {dimension_numbers = #tpu.dot_dimension_numbers<[1], [1], [0], [0], [0, 0, 1, 0], [], []>} : vector<8x32xf32>, vector<128x32xf32>, vector<8x128xf32> -> vector<8x128xf32>
    %6 = arith.mulf %1, %1 : vector<128x32xf32>
    %cst_4 = arith.constant dense<0.000000e+00> : vector<128xf32>
    %7 = vector.multi_reduction <add>, %6, %cst_4 [1] : vector<128x32xf32> to vector<128xf32>
    %8 = vector.shape_cast %7 : vector<128xf32> to vector<128x1xf32>
    %9 = math.sqrt %8 : vector<128x1xf32>
    %cst_5 = arith.constant 9.99999974E-6 : f32
    %10 = vector.broadcast %cst_5 : f32 to vector<128x1xf32>
    %11 = arith.addf %9, %10 : vector<128x1xf32>
    %12 = tpu.reciprocal %11 {approx = true} : vector<128x1xf32> -> vector<128x1xf32>
    %c0_6 = arith.constant 0 : index
    %c0_7 = arith.constant 0 : index
    %13 = vector.load %arg5[%c0_6, %c0_7] : memref<8x1xf32, #tpu.memory_space<vmem>>, vector<8x1xf32>
    %14 = vector.broadcast %13 : vector<8x1xf32> to vector<8x128xf32>
    %15 = arith.mulf %5, %14 : vector<8x128xf32>
    %16 = tpu.transpose %12, [1, 0] : vector<128x1xf32> -> vector<1x128xf32>
    %17 = vector.broadcast %16 : vector<1x128xf32> to vector<8x128xf32>
    %18 = arith.mulf %15, %17 : vector<8x128xf32>
    %c0_8 = arith.constant 0 : index
    %c0_9 = arith.constant 0 : index
    %19 = vector.load %arg4[%c0_8, %c0_9] : memref<8x128xf32, #tpu.memory_space<vmem>>, vector<8x128xf32>
    tpu.vector_store %arg4[%c0_8, %c0_9], %18 {strides = array<i32>} : memref<8x128xf32, #tpu.memory_space<vmem>>, vector<8x128xf32>,
    return
  }
  func.func @transform_0(%arg0: i32, %arg1: i32) -> (i32, i32) {
    %c0_i32 = arith.constant 0 : i32
    %c0_i32_0 = arith.constant 0 : i32
    return %arg0, %c0_i32 : i32, i32
  }
  func.func @transform_1(%arg0: i32, %arg1: i32) -> (i32, i32) {
    %c0_i32 = arith.constant 0 : i32
    %c0_i32_0 = arith.constant 0 : i32
    return %arg1, %c0_i32 : i32, i32
  }
  func.func @transform_2(%arg0: i32, %arg1: i32) -> (i32, i32) {
    %c0_i32 = arith.constant 0 : i32
    return %arg0, %arg1 : i32, i32
  }
}

</mosaic_0001>

<llo_original>
// kernel: dist_linear.1
$region0: #{dist_linear.1}
  #allocation0 [shape = 'u32[]', space=smem, size = 0x4, offset = 0x4, fixed_abs, tag = 'smem constant byte address 0x4 - core index']
  #allocation1 [shape = 'u32[144,128]{1,0:T(1,128)}', space=vmem, size = 0x12000, scoped, tag = 'internal scratch']
  #allocation2 [shape = 'f32[8,1]{1,0:T(8,128)}', space=vmem, size = 0x1000, scoped, tag = 'scratch operand']
  %s0 = inlined_call_operand.vmem [shape: f32[8,32], index: 0, kind: input, shape index: {}]
  %s1 = inlined_call_operand.vmem [shape: f32[128,32], index: 1, kind: input, shape index: {}]
  %s2 = inlined_call_operand.hbm [shape: f32[8,128], index: 2, kind: output, shape index: {}]
  %s3 = sld [smem:[#allocation0]]
  $region22: #{dist_linear.1} parent=0
    _
  %s5 = ssub.s32 1, %s3
  %s6 = scalar_select 0, %s5, %s3
  $region1: #{dist_linear.1} parent=0
    #allocation3 [shape = 'u8[4096]{0}', space=vmem, size = 0x1000, scoped, tag = 'output window, operand 0, single buffered']
    #allocation4 [shape = 's32[1]{0}', space=sflag, size = 0x4, scoped, tag = 'scoped memory for dist_linear.1']
    %7 = vsyncpa [#allocation4], 0
    // Predicated region
    $region2: #{dist_linear.1} parent=1 // pred_check
      _
    $region3: #{dist_linear.1} parent=1 // pred_check_branch
      %9 = sbr.rel (0) target = $region5
    $region4: #{dist_linear.1} parent=1 // pred_region
      _
    $region5: #{dist_linear.1} parent=1 // pred_fallthru
      _
    // Predicated region
    $region6: #{dist_linear.1} parent=1 // pred_check
      _
    $region7: #{dist_linear.1} parent=1 // pred_check_branch
      %11 = sbr.rel (0) target = $region9
    $region8: #{dist_linear.1} parent=1 // pred_region
      _
    $region9: #{dist_linear.1} parent=1 // pred_fallthru
      _
    %v12 = vld [vmem:[%s0] sm:$0xff]
    %v13 = vld [vmem:[%s1] sm:$0xff]
    %v14 = vld [vmem:[%s1 + $0x8] sm:$0xff]
    %v15 = vld [vmem:[%s1 + $0x10] sm:$0xff]
    %v16 = vld [vmem:[%s1 + $0x18] sm:$0xff]
    %v17 = vld [vmem:[%s1 + $0x20] sm:$0xff]
    %v18 = vld [vmem:[%s1 + $0x28] sm:$0xff]
    %v19 = vld [vmem:[%s1 + $0x30] sm:$0xff]
    %v20 = vld [vmem:[%s1 + $0x38] sm:$0xff]
    %v21 = vld [vmem:[%s1 + $0x40] sm:$0xff]
    %v22 = vld [vmem:[%s1 + $0x48] sm:$0xff]
    %v23 = vld [vmem:[%s1 + $0x50] sm:$0xff]
    %v24 = vld [vmem:[%s1 + $0x58] sm:$0xff]
    %v25 = vld [vmem:[%s1 + $0x60] sm:$0xff]
    %v26 = vld [vmem:[%s1 + $0x68] sm:$0xff]
    %v27 = vld [vmem:[%s1 + $0x70] sm:$0xff]
    %v28 = vld [vmem:[%s1 + $0x78] sm:$0xff]
    %p29 = scmp.eq.s32.totalorder 0, 0
    // Predicated region
    $region10: #{dist_linear.1} parent=1 // pred_check
      %p30 = pneg %p29
    $region11: #{dist_linear.1} parent=1 // pred_check_branch
      %32 = sbr.rel (%p30) target = $region13
    $region12: #{dist_linear.1} parent=1 // pred_region
      %v33 = vmul.f32 %v12, %v12
      %vm34 = vcmask 261120
      %v35 = vsel %vm34, %v33, 0.0
      %36 = vadd.xlane.f32.xlu0 %v35
      %v37 = vpop.xlane.xlu0 %36
      %v38 = vrsqrt.pop %v37
      %v39 = vmul.f32 %v37, %v38
      %vm40 = vcmp.eq.f32.partialorder %v37, inf
      %v41 = vsel %vm40, %v37, %v39
      %vm42 = vcmp.eq.f32.partialorder %v37, 0.0
      %v43 = vand.u32 %v37, 2147483648
      %v44 = vsel %vm42, %v43, %v41
      %v45 = vadd.f32 %v44, 1e-05
      %v46 = vrcp.pop %v45
      %v47 = vmul.f32 %v46, 10.0
      %vm48 = vcmask 7168
      %49 = vst.msk [vmem:[#allocation2] sm:$0xff] %vm48, %v47
    $region13: #{dist_linear.1} parent=1 // pred_fallthru
      _
    %vm50 = vcmask 261120
    %v52 = vsel %vm50, %v12, 0
    %v55 = vsel %vm50, %v13, 0
    %v58 = vsel %vm50, %v14, 0
    %v61 = vsel %vm50, %v15, 0
    %v64 = vsel %vm50, %v16, 0
    %v67 = vsel %vm50, %v17, 0
    %v70 = vsel %vm50, %v18, 0
    %v73 = vsel %vm50, %v19, 0
    %v76 = vsel %vm50, %v20, 0
    %v79 = vsel %vm50, %v21, 0
    %v82 = vsel %vm50, %v22, 0
    %v85 = vsel %vm50, %v23, 0
    %v88 = vsel %vm50, %v24, 0
    %v91 = vsel %vm50, %v25, 0
    %v94 = vsel %vm50, %v26, 0
    %v97 = vsel %vm50, %v27, 0
    %v100 = vsel %vm50, %v28, 0
    %102 = vmatprep.subr.mxu0 0.0
    %103 = vmatpush1.xpose.msra.mxu0 %v55
    %104 = vmatprep.subr.mxu0 0.0
    %105 = vmatpush1.xpose.msra.mxu0 %v58
    %106 = vmatprep.subr.mxu0 0.0
    %107 = vmatpush1.xpose.msra.mxu0 %v61
    %108 = vmatprep.subr.mxu0 0.0
    %109 = vmatpush1.xpose.msra.mxu0 %v64
    %110 = vmatprep.subr.mxu0 0.0
    %111 = vmatpush1.xpose.msra.mxu0 %v67
    %112 = vmatprep.subr.mxu0 0.0
    %113 = vmatpush1.xpose.msra.mxu0 %v70
    %114 = vmatprep.subr.mxu0 0.0
    %115 = vmatpush1.xpose.msra.mxu0 %v73
    %116 = vmatprep.subr.mxu0 0.0
    %117 = vmatpush1.xpose.msra.mxu0 %v76
    %118 = vmatprep.subr.mxu0 0.0
    %119 = vmatpush1.xpose.msra.mxu0 %v79
    %120 = vmatprep.subr.mxu0 0.0
    %121 = vmatpush1.xpose.msra.mxu0 %v82
    %122 = vmatprep.subr.mxu0 0.0
    %123 = vmatpush1.xpose.msra.mxu0 %v85
    %124 = vmatprep.subr.mxu0 0.0
    %125 = vmatpush1.xpose.msra.mxu0 %v88
    %126 = vmatprep.subr.mxu0 0.0
    %127 = vmatpush1.xpose.msra.mxu0 %v91
    %128 = vmatprep.subr.mxu0 0.0
    %129 = vmatpush1.xpose.msra.mxu0 %v94
    %130 = vmatprep.subr.mxu0 0.0
    %131 = vmatpush1.xpose.msra.mxu0 %v97
    %132 = vmatprep.subr.mxu0 0.0
    %133 = vmatpush1.xpose.msra.mxu0 %v100
    %134 = vmatprep.subr.mxu0 0.0
    %135 = vmatpush1.xpose.msra.mxu0 0.0
    %136 = vmatprep.subr.mxu0 0.0
    %137 = vmatpush1.xpose.msra.mxu0 0.0
    %138 = vmatprep.subr.mxu0 0.0
    %139 = vmatpush1.xpose.msra.mxu0 0.0
    %140 = vmatprep.subr.mxu0 0.0
    %141 = vmatpush1.xpose.msra.mxu0 0.0
    %142 = vmatprep.subr.mxu0 0.0
    %143 = vmatpush1.xpose.msra.mxu0 0.0
    %144 = vmatprep.subr.mxu0 0.0
    %145 = vmatpush1.xpose.msra.mxu0 0.0
    %146 = vmatprep.subr.mxu0 0.0
    %147 = vmatpush1.xpose.msra.mxu0 0.0
    %148 = vmatprep.subr.mxu0 0.0
    %149 = vmatpush1.xpose.msra.mxu0 0.0
    %150 = vmatprep.subr.mxu0 0.0
    %151 = vmatpush1.xpose.msra.mxu0 0.0
    %152 = vmatprep.subr.mxu0 0.0
    %153 = vmatpush1.xpose.msra.mxu0 0.0
    %154 = vmatprep.subr.mxu0 0.0
    %155 = vmatpush1.xpose.msra.mxu0 0.0
    %156 = vmatprep.subr.mxu0 0.0
    %157 = vmatpush1.xpose.msra.mxu0 0.0
    %158 = vmatprep.subr.mxu0 0.0
    %159 = vmatpush1.xpose.msra.mxu0 0.0
    %160 = vmatprep.subr.mxu0 0.0
    %161 = vmatpush1.xpose.msra.mxu0 0.0
    %162 = vmatprep.subr.mxu0 0.0
    %163 = vmatpush1.xpose.msra.mxu0 0.0
    %164 = vmatprep.subr.mxu0 0.0
    %165 = vmatpush1.xpose.msra.mxu0 0.0
    %166 = vmatprep.mubr.f32.mxu0 0.0
    %167 = vmatmul.mubr.f32.gmra.mrb[0].mxu0 %v52
    %v168 = vpop.f32.mrb[0].mxu0
    %v169 = vadd.f32 0.0, %v168
    %v170 = vpop.f32.mrb[0].mxu0
    %171 = vdwg.mxu0
    %v172 = vmul.f32 %v13, %v13
    %v173 = vmul.f32 %v14, %v14
    %v174 = vmul.f32 %v15, %v15
    %v175 = vmul.f32 %v16, %v16
    %v176 = vmul.f32 %v17, %v17
    %v177 = vmul.f32 %v18, %v18
    %v178 = vmul.f32 %v19, %v19
    %v179 = vmul.f32 %v20, %v20
    %v180 = vmul.f32 %v21, %v21
    %v181 = vmul.f32 %v22, %v22
    %v182 = vmul.f32 %v23, %v23
    %v183 = vmul.f32 %v24, %v24
    %v184 = vmul.f32 %v25, %v25
    %v185 = vmul.f32 %v26, %v26
    %v186 = vmul.f32 %v27, %v27
    %v187 = vmul.f32 %v28, %v28
    %v188 = vsel %vm50, %v172, 0.0
    %189 = vadd.xlane.f32.xlu0 %v188
    %v190 = vpop.xlane.xlu0 %189
    %v191 = vsel %vm50, %v173, 0.0
    %192 = vadd.xlane.f32.xlu0 %v191
    %v193 = vpop.xlane.xlu0 %192
    %v194 = vsel %vm50, %v174, 0.0
    %195 = vadd.xlane.f32.xlu0 %v194
    %v196 = vpop.xlane.xlu0 %195
    %v197 = vsel %vm50, %v175, 0.0
    %198 = vadd.xlane.f32.xlu0 %v197
    %v199 = vpop.xlane.xlu0 %198
    %v200 = vsel %vm50, %v176, 0.0
    %201 = vadd.xlane.f32.xlu0 %v200
    %v202 = vpop.xlane.xlu0 %201
    %v203 = vsel %vm50, %v177, 0.0
    %204 = vadd.xlane.f32.xlu0 %v203
    %v205 = vpop.xlane.xlu0 %204
    %v206 = vsel %vm50, %v178, 0.0
    %207 = vadd.xlane.f32.xlu0 %v206
    %v208 = vpop.xlane.xlu0 %207
    %v209 = vsel %vm50, %v179, 0.0
    %210 = vadd.xlane.f32.xlu0 %v209
    %v211 = vpop.xlane.xlu0 %210
    %v212 = vsel %vm50, %v180, 0.0
    %213 = vadd.xlane.f32.xlu0 %v212
    %v214 = vpop.xlane.xlu0 %213
    %v215 = vsel %vm50, %v181, 0.0
    %216 = vadd.xlane.f32.xlu0 %v215
    %v217 = vpop.xlane.xlu0 %216
    %v218 = vsel %vm50, %v182, 0.0
    %219 = vadd.xlane.f32.xlu0 %v218
    %v220 = vpop.xlane.xlu0 %219
    %v221 = vsel %vm50, %v183, 0.0
    %222 = vadd.xlane.f32.xlu0 %v221
    %v223 = vpop.xlane.xlu0 %222
    %v224 = vsel %vm50, %v184, 0.0
    %225 = vadd.xlane.f32.xlu0 %v224
    %v226 = vpop.xlane.xlu0 %225
    %v227 = vsel %vm50, %v185, 0.0
    %228 = vadd.xlane.f32.xlu0 %v227
    %v229 = vpop.xlane.xlu0 %228
    %v230 = vsel %vm50, %v186, 0.0
    %231 = vadd.xlane.f32.xlu0 %v230
    %v232 = vpop.xlane.xlu0 %231
    %v233 = vsel %vm50, %v187, 0.0
    %234 = vadd.xlane.f32.xlu0 %v233
    %v235 = vpop.xlane.xlu0 %234
    %v236 = vrsqrt.pop %v190
    %v237 = vmul.f32 %v190, %v236
    %vm238 = vcmp.eq.f32.partialorder %v190, inf
    %v239 = vsel %vm238, %v190, %v237
    %vm240 = vcmp.eq.f32.partialorder %v190, 0.0
    %v241 = vand.u32 %v190, 2147483648
    %v242 = vsel %vm240, %v241, %v239
    %v243 = vrsqrt.pop %v193
    %v244 = vmul.f32 %v193, %v243
    %vm245 = vcmp.eq.f32.partialorder %v193, inf
    %v246 = vsel %vm245, %v193, %v244
    %vm247 = vcmp.eq.f32.partialorder %v193, 0.0
    %v248 = vand.u32 %v193, 2147483648
    %v249 = vsel %vm247, %v248, %v246
    %v250 = vrsqrt.pop %v196
    %v251 = vmul.f32 %v196, %v250
    %vm252 = vcmp.eq.f32.partialorder %v196, inf
    %v253 = vsel %vm252, %v196, %v251
    %vm254 = vcmp.eq.f32.partialorder %v196, 0.0
    %v255 = vand.u32 %v196, 2147483648
    %v256 = vsel %vm254, %v255, %v253
    %v257 = vrsqrt.pop %v199
    %v258 = vmul.f32 %v199, %v257
    %vm259 = vcmp.eq.f32.partialorder %v199, inf
    %v260 = vsel %vm259, %v199, %v258
    %vm261 = vcmp.eq.f32.partialorder %v199, 0.0
    %v262 = vand.u32 %v199, 2147483648
    %v263 = vsel %vm261, %v262, %v260
    %v264 = vrsqrt.pop %v202
    %v265 = vmul.f32 %v202, %v264
    %vm266 = vcmp.eq.f32.partialorder %v202, inf
    %v267 = vsel %vm266, %v202, %v265
    %vm268 = vcmp.eq.f32.partialorder %v202, 0.0
    %v269 = vand.u32 %v202, 2147483648
    %v270 = vsel %vm268, %v269, %v267
    %v271 = vrsqrt.pop %v205
    %v272 = vmul.f32 %v205, %v271
    %vm273 = vcmp.eq.f32.partialorder %v205, inf
    %v274 = vsel %vm273, %v205, %v272
    %vm275 = vcmp.eq.f32.partialorder %v205, 0.0
    %v276 = vand.u32 %v205, 2147483648
    %v277 = vsel %vm275, %v276, %v274
    %v278 = vrsqrt.pop %v208
    %v279 = vmul.f32 %v208, %v278
    %vm280 = vcmp.eq.f32.partialorder %v208, inf
    %v281 = vsel %vm280, %v208, %v279
    %vm282 = vcmp.eq.f32.partialorder %v208, 0.0
    %v283 = vand.u32 %v208, 2147483648
    %v284 = vsel %vm282, %v283, %v281
    %v285 = vrsqrt.pop %v211
    %v286 = vmul.f32 %v211, %v285
    %vm287 = vcmp.eq.f32.partialorder %v211, inf
    %v288 = vsel %vm287, %v211, %v286
    %vm289 = vcmp.eq.f32.partialorder %v211, 0.0
    %v290 = vand.u32 %v211, 2147483648
    %v291 = vsel %vm289, %v290, %v288
    %v292 = vrsqrt.pop %v214
    %v293 = vmul.f32 %v214, %v292
    %vm294 = vcmp.eq.f32.partialorder %v214, inf
    %v295 = vsel %vm294, %v214, %v293
    %vm296 = vcmp.eq.f32.partialorder %v214, 0.0
    %v297 = vand.u32 %v214, 2147483648
    %v298 = vsel %vm296, %v297, %v295
    %v299 = vrsqrt.pop %v217
    %v300 = vmul.f32 %v217, %v299
    %vm301 = vcmp.eq.f32.partialorder %v217, inf
    %v302 = vsel %vm301, %v217, %v300
    %vm303 = vcmp.eq.f32.partialorder %v217, 0.0
    %v304 = vand.u32 %v217, 2147483648
    %v305 = vsel %vm303, %v304, %v302
    %v306 = vrsqrt.pop %v220
    %v307 = vmul.f32 %v220, %v306
    %vm308 = vcmp.eq.f32.partialorder %v220, inf
    %v309 = vsel %vm308, %v220, %v307
    %vm310 = vcmp.eq.f32.partialorder %v220, 0.0
    %v311 = vand.u32 %v220, 2147483648
    %v312 = vsel %vm310, %v311, %v309
    %v313 = vrsqrt.pop %v223
    %v314 = vmul.f32 %v223, %v313
    %vm315 = vcmp.eq.f32.partialorder %v223, inf
    %v316 = vsel %vm315, %v223, %v314
    %vm317 = vcmp.eq.f32.partialorder %v223, 0.0
    %v318 = vand.u32 %v223, 2147483648
    %v319 = vsel %vm317, %v318, %v316
    %v320 = vrsqrt.pop %v226
    %v321 = vmul.f32 %v226, %v320
    %vm322 = vcmp.eq.f32.partialorder %v226, inf
    %v323 = vsel %vm322, %v226, %v321
    %vm324 = vcmp.eq.f32.partialorder %v226, 0.0
    %v325 = vand.u32 %v226, 2147483648
    %v326 = vsel %vm324, %v325, %v323
    %v327 = vrsqrt.pop %v229
    %v328 = vmul.f32 %v229, %v327
    %vm329 = vcmp.eq.f32.partialorder %v229, inf
    %v330 = vsel %vm329, %v229, %v328
    %vm331 = vcmp.eq.f32.partialorder %v229, 0.0
    %v332 = vand.u32 %v229, 2147483648
    %v333 = vsel %vm331, %v332, %v330
    %v334 = vrsqrt.pop %v232
    %v335 = vmul.f32 %v232, %v334
    %vm336 = vcmp.eq.f32.partialorder %v232, inf
    %v337 = vsel %vm336, %v232, %v335
    %vm338 = vcmp.eq.f32.partialorder %v232, 0.0
    %v339 = vand.u32 %v232, 2147483648
    %v340 = vsel %vm338, %v339, %v337
    %v341 = vrsqrt.pop %v235
    %v342 = vmul.f32 %v235, %v341
    %vm343 = vcmp.eq.f32.partialorder %v235, inf
    %v344 = vsel %vm343, %v235, %v342
    %vm345 = vcmp.eq.f32.partialorder %v235, 0.0
    %v346 = vand.u32 %v235, 2147483648
    %v347 = vsel %vm345, %v346, %v344
    %v348 = vadd.f32 %v242, 1e-05
    %v349 = vadd.f32 %v249, 1e-05
    %v350 = vadd.f32 %v256, 1e-05
    %v351 = vadd.f32 %v263, 1e-05
    %v352 = vadd.f32 %v270, 1e-05
    %v353 = vadd.f32 %v277, 1e-05
    %v354 = vadd.f32 %v284, 1e-05
    %v355 = vadd.f32 %v291, 1e-05
    %v356 = vadd.f32 %v298, 1e-05
    %v357 = vadd.f32 %v305, 1e-05
    %v358 = vadd.f32 %v312, 1e-05
    %v359 = vadd.f32 %v319, 1e-05
    %v360 = vadd.f32 %v326, 1e-05
    %v361 = vadd.f32 %v333, 1e-05
    %v362 = vadd.f32 %v340, 1e-05
    %v363 = vadd.f32 %v347, 1e-05
    %v364 = vrcp.pop %v348
    %v365 = vrcp.pop %v349
    %v366 = vrcp.pop %v350
    %v367 = vrcp.pop %v351
    %v368 = vrcp.pop %v352
    %v369 = vrcp.pop %v353
    %v370 = vrcp.pop %v354
    %v371 = vrcp.pop %v355
    %v372 = vrcp.pop %v356
    %v373 = vrcp.pop %v357
    %v374 = vrcp.pop %v358
    %v375 = vrcp.pop %v359
    %v376 = vrcp.pop %v360
    %v377 = vrcp.pop %v361
    %v378 = vrcp.pop %v362
    %v379 = vrcp.pop %v363
    %v380 = vld [vmem:[#allocation2] sm:$0xff]
    %382 = vset.pattern.permute.xlu0 0
    %383 = vperm.xlu0 %382, %v380
    %v384 = vpop.permute.xlu0 %383
    %v386 = vmul.f32 %v169, %v384
    %387 = vxpose.xlu0.b32.start [1/16] %v364, 128
    %388 = vxpose.xlu0.b32.cont [2/16] %v365, 128
    %389 = vxpose.xlu0.b32.cont [3/16] %v366, 128
    %390 = vxpose.xlu0.b32.cont [4/16] %v367, 128
    %391 = vxpose.xlu0.b32.cont [5/16] %v368, 128
    %392 = vxpose.xlu0.b32.cont [6/16] %v369, 128
    %393 = vxpose.xlu0.b32.cont [7/16] %v370, 128
    %394 = vxpose.xlu0.b32.cont [8/16] %v371, 128
    %395 = vxpose.xlu0.b32.cont [9/16] %v372, 128
    %396 = vxpose.xlu0.b32.cont [10/16] %v373, 128
    %397 = vxpose.xlu0.b32.cont [11/16] %v374, 128
    %398 = vxpose.xlu0.b32.cont [12/16] %v375, 128
    %399 = vxpose.xlu0.b32.cont [13/16] %v376, 128
    %400 = vxpose.xlu0.b32.cont [14/16] %v377, 128
    %401 = vxpose.xlu0.b32.cont [15/16] %v378, 128
    %402 = vxpose.xlu0.b32.end [16/16] %v379, 128
    %v403 = vpop.trf.xlu0
    %v404 = vpop.trf.xlu0
    %v405 = vpop.trf.xlu0
    %v406 = vpop.trf.xlu0
    %v407 = vpop.trf.xlu0
    %v408 = vpop.trf.xlu0
    %v409 = vpop.trf.xlu0
    %v410 = vpop.trf.xlu0
    %v411 = vpop.trf.xlu0
    %v412 = vpop.trf.xlu0
    %v413 = vpop.trf.xlu0
    %v414 = vpop.trf.xlu0
    %v415 = vpop.trf.xlu0
    %v416 = vpop.trf.xlu0
    %v417 = vpop.trf.xlu0
    %v418 = vpop.trf.xlu0
    %v419 = vlaneseq
    %v420 = vshrl.u32 %v419, 7
    %v421 = vsub.s32 0, %v420
    %v422 = vrot.slane %v403, %v421
    %v423 = vmul.f32 %v386, %v422
    %424 = vst [vmem:[#allocation3] sm:$0xff] %v423
    // Predicated region
    $region14: #{dist_linear.1} parent=1 // pred_check
      _
    $region15: #{dist_linear.1} parent=1 // pred_check_branch
      %426 = sbr.rel (0) target = $region17
    $region16: #{dist_linear.1} parent=1 // pred_region
      %s428 = ssub.s32 128, 128
      %429 = vsyncadd [#allocation4], %s428
      %s431 = sshll.u32 [#allocation3], 4
      %s432 = int_to_ptr.vmem [resolvable:$true] %s431
      %434 = dma.vmem_to_hbm [thread:$0]  %s432, 128, %s2, [#allocation4]
    $region17: #{dist_linear.1} parent=1 // pred_fallthru
      _
    // Predicated region
    $region18: #{dist_linear.1} parent=1 // pred_check
      _
    $region19: #{dist_linear.1} parent=1 // pred_check_branch
      %436 = sbr.rel (0) target = $region21
    $region20: #{dist_linear.1} parent=1 // pred_region
      %437 = dma.done [#allocation4], 128
    $region21: #{dist_linear.1} parent=1 // pred_fallthru
      _
    %438 = vsyncpa [#allocation4], 1

</llo_original>
